<compile_context>
chip_gen: v7x
topology: tpu7x:2x2x1
jax: 0.10.0
libtpu: 0.0.40
codegen_flags: <defaults>
</compile_context>

<pallas_src>
import functools
import math

import jax
import jax.numpy as jnp
from jax import lax
from jax.experimental import pallas as pl
from jax.experimental.pallas import tpu as pltpu


# bias_act defaults: (alpha, gain) per activation (StyleGAN bias_act table).
_ACT_TABLE = {
    'linear':   (None, 1.0),
    'relu':     (None, math.sqrt(2.0)),
    'lrelu':    (0.2,  math.sqrt(2.0)),
    'tanh':     (None, 1.0),
    'sigmoid':  (None, 1.0),
    'elu':      (None, 1.0),
    'selu':     (None, 1.0),
    'softplus': (None, 1.0),
    'swish':    (None, math.sqrt(2.0)),
}
_TRANSCENDENTAL_ACTS = ('tanh', 'sigmoid', 'elu', 'selu', 'softplus', 'swish')


def _fc_kernel(x_ref, w_ref, b_ref, o_ref, acc_ref, *, weight_gain, activation):
    """One (tm, tn) output tile, accumulated over the K grid axis.

    x_ref: (tm, tk)   w_ref: (tn, tk)   b_ref: (1, tn) f32
    o_ref: (tm, tn)   acc_ref: (tm, tn) f32 scratch
    """
    k = pl.program_id(2)

    @pl.when(k == 0)
    def _():
        acc_ref[...] = jnp.zeros_like(acc_ref)

    # MXU matmul contracting the last dim of both operands (no materialized
    # transpose of the weight tile); operands stay in their native dtype,
    # accumulation in f32.
    acc_ref[...] += lax.dot_general(
        x_ref[...], w_ref[...],
        dimension_numbers=(((1,), (1,)), ((), ())),
        preferred_element_type=jnp.float32)

    @pl.when(k == pl.num_programs(2) - 1)
    def _():
        # weight_gain is applied once to the small (tm, tn) accumulator
        # (far fewer VALU ops than scaling the (tn, tk) weight tile each step),
        # then bias + activation in f32; only the final result is cast down.
        acc = acc_ref[...] * weight_gain + b_ref[...]
        alpha, gain = _ACT_TABLE[activation]
        if activation == 'linear':
            out = acc
        elif activation == 'relu':
            out = jnp.maximum(acc, 0.0)
        elif activation == 'lrelu':
            out = jnp.where(acc >= 0.0, acc, alpha * acc)
        elif activation == 'tanh':
            out = jnp.tanh(acc)
        elif activation == 'sigmoid':
            out = jax.nn.sigmoid(acc)
        elif activation == 'elu':
            out = jax.nn.elu(acc)
        elif activation == 'selu':
            out = jax.nn.selu(acc)
        elif activation == 'softplus':
            out = jax.nn.softplus(acc)
        elif activation == 'swish':
            out = acc * jax.nn.sigmoid(acc)
        else:  # validated in the wrapper; unreachable
            out = acc
        if gain != 1.0:
            out = out * gain
        o_ref[...] = out.astype(o_ref.dtype)


def _round_up(v, m):
    return ((v + m - 1) // m) * m


def _cdiv(a, b):
    return -(-a // b)


def _sublane_multiple(dtype):
    # Sublane packing: f32 -> 8, bf16/f16 -> 16, int8/fp8 -> 32.
    return {4: 8, 2: 16, 1: 32}.get(jnp.dtype(dtype).itemsize, 8)


def _choose_tiles(M, N, K, dtype, tm, tn, tk):
    sub = _sublane_multiple(dtype)
    # Clamp tm to the (sublane-rounded) M so ragged M is not grossly over-padded.
    tm = min(tm, _round_up(M, sub))
    tn = min(tn, _round_up(N, 128))
    tk = min(tk, _round_up(K, 128))

    # v7x has 2 TensorCores: give the "parallel" grid at least 2 blocks when N
    # spans >= 2 lane blocks (harmless on single-TC v5e/v6e).
    Np0 = _round_up(N, 128)
    if _cdiv(M, tm) * _cdiv(Np0, tn) < 2 and Np0 // 128 >= 2:
        tn = _cdiv(Np0 // 128, 2) * 128
    return tm, tn, tk


def _vmem_estimate_bytes(tm, tn, tk, in_dtype, out_dtype):
    in_sz = jnp.dtype(in_dtype).itemsize
    out_sz = jnp.dtype(out_dtype).itemsize
    return (2 * (tm * tk + tn * tk) * in_sz    # double-buffered x / weight tiles
            + 2 * tm * tn * out_sz             # double-buffered output tile
            + 2 * tn * 4                       # bias tile
            + tm * tn * 4)                     # f32 accumulator


def fully_connected(x, weight, bias=None, *, lr_multiplier=1.0,
                    activation='linear', tm=512, tn=512, tk=512,
                    input_buffering=None):
    """Pallas equivalent of FullyConnectedLayer.forward.

    x: (M, K), weight: (N, K), bias: (N,) or None  ->  (M, N) in x.dtype.
    """
    if activation not in _ACT_TABLE:
        raise ValueError(f"unsupported activation: {activation!r}")

    M, K = x.shape
    N, K2 = weight.shape
    assert K == K2, (K, K2)
    weight_gain = float(lr_multiplier) / math.sqrt(K)

    # Match PyTorch: weight.to(x.dtype) before the matmul (keeps the MXU in
    # bf16 mode and halves weight HBM bytes when x is bf16).
    weight = weight.astype(x.dtype)
    # bias.to(x.dtype) for semantics; kept f32 at the kernel boundary so the
    # add happens in the f32 accumulator.
    if bias is None:
        bias2d = jnp.zeros((1, N), jnp.float32)
    else:
        bias2d = bias.astype(x.dtype).astype(jnp.float32).reshape(1, N)

    tm, tn, tk = _choose_tiles(M, N, K, x.dtype, tm, tn, tk)

    # Ragged shapes: zero-pad to tile multiples (zeros contribute 0 to the
    # matmul), slice the valid region from the output afterwards.
    # NOTE: weight/bias are static across calls in the original module; callers
    # on a hot path should pre-pad/pre-cast them once outside this wrapper.
    Mp, Np, Kp = _round_up(M, tm), _round_up(N, tn), _round_up(K, tk)
    if (Mp, Kp) != (M, K):
        x = jnp.pad(x, ((0, Mp - M), (0, Kp - K)))
    if (Np, Kp) != (N, K):
        weight = jnp.pad(weight, ((0, Np - N), (0, Kp - K)))
    if Np != N:
        bias2d = jnp.pad(bias2d, ((0, 0), (0, Np - N)))

    grid = (Mp // tm, Np // tn, Kp // tk)
    kernel = functools.partial(_fc_kernel, weight_gain=weight_gain,
                               activation=activation)

    def _in_spec(shape, index_map):
        if input_buffering is None:
            return pl.BlockSpec(shape, index_map)
        # Deeper multi-buffering on the K axis when the k-loop is DMA-limited.
        return pl.BlockSpec(shape, index_map,
                            pipeline_mode=pl.Buffered(input_buffering))

    # Compiler params: only raise the scoped-VMEM limit when the tile footprint
    # actually needs it (keeps headroom on v7x's 64 MiB part / v5e's 16 MiB
    # scoped default).
    cp_kwargs = dict(dimension_semantics=("parallel", "parallel", "arbitrary"))
    est_vmem = _vmem_estimate_bytes(tm, tn, tk, x.dtype, x.dtype)
    if est_vmem > 12 * 1024 * 1024:
        cp_kwargs["vmem_limit_bytes"] = min(int(est_vmem * 1.5), 64 * 1024 * 1024)

    # Cost estimate: weight is re-streamed once per M-tile pass, x once per
    # N-tile pass; transcendental count reflects the epilogue activation.
    in_sz = jnp.dtype(x.dtype).itemsize
    bytes_accessed = int((Np // tn) * Mp * Kp * in_sz
                         + (Mp // tm) * Np * Kp * in_sz
                         + Mp * Np * in_sz
                         + Np * 4)
    transcendentals = Mp * Np if activation in _TRANSCENDENTAL_ACTS else 0

    out = pl.pallas_call(
        kernel,
        out_shape=jax.ShapeDtypeStruct((Mp, Np), x.dtype),
        grid_spec=pltpu.PrefetchScalarGridSpec(
            num_scalar_prefetch=0,
            grid=grid,
            in_specs=[
                _in_spec((tm, tk), lambda i, j, k: (i, k)),       # x tile
                _in_spec((tn, tk), lambda i, j, k: (j, k)),       # weight tile
                pl.BlockSpec((1, tn), lambda i, j, k: (0, j)),    # bias tile
            ],
            out_specs=pl.BlockSpec((tm, tn), lambda i, j, k: (i, j)),
            scratch_shapes=[pltpu.VMEM((tm, tn), jnp.float32)],
        ),
        compiler_params=pltpu.CompilerParams(**cp_kwargs),
        cost_estimate=pl.CostEstimate(
            flops=2 * Mp * Np * Kp,
            transcendentals=transcendentals,
            bytes_accessed=bytes_accessed),
    )(x, weight, bias2d)

    if (Mp, Np) != (M, N):
        out = out[:M, :N]
    return out


if __name__ == "__main__":
    key = jax.random.PRNGKey(0)
    k1, k2, k3, k4, k5, k6 = jax.random.split(key, 6)

    lr_multiplier = 1.0
    weight_init = 1.0
    bias_init = 0.0

    # Case 1: aligned shapes, linear activation (addmm path), f32.
    M1, K1, N1 = 16, 64, 128
    x1 = jax.random.normal(k1, (M1, K1), dtype=jnp.float32)
    w1 = jax.random.normal(k2, (N1, K1), dtype=jnp.float32) * (weight_init / lr_multiplier)
    b1 = jnp.full((N1,), bias_init / lr_multiplier, dtype=jnp.float32)

    y1 = jax.block_until_ready(
        fully_connected(x1, w1, b1, lr_multiplier=lr_multiplier,
                        activation='linear'))
    g1 = lr_multiplier / math.sqrt(K1)
    ref1 = x1 @ (w1 * g1).T + b1[None, :]
    assert y1.shape == (M1, N1)
    assert jnp.allclose(y1, ref1, atol=1e-4, rtol=1e-4)

    # Case 2: ragged shapes (padding path, in_features = channel = 27) with
    # lrelu activation (bias_act path), f32.
    M2, K2, N2 = 10, 27, 96
    x2 = jax.random.normal(k3, (M2, K2), dtype=jnp.float32)
    w2 = jax.random.normal(k4, (N2, K2), dtype=jnp.float32)
    b2 = jnp.full((N2,), 0.1, dtype=jnp.float32)

    y2 = jax.block_until_ready(fully_connected(x2, w2, b2, activation='lrelu'))
    g2 = 1.0 / math.sqrt(K2)
    pre = x2 @ (w2 * g2).T + b2[None, :]
    ref2 = jnp.where(pre >= 0.0, pre, 0.2 * pre) * math.sqrt(2.0)
    assert y2.shape == (M2, N2)
    assert jnp.allclose(y2, ref2, atol=1e-4, rtol=1e-4)

    # Case 3: bf16 activations with f32-stored params (exercises the
    # weight.to(x.dtype) cast and the v7x 2-TC tn split), relu activation.
    M3, K3, N3 = 32, 64, 256
    x3 = jax.random.normal(k5, (M3, K3), dtype=jnp.float32).astype(jnp.bfloat16)
    w3 = jax.random.normal(k6, (N3, K3), dtype=jnp.float32)
    b3 = jnp.full((N3,), 0.05, dtype=jnp.float32)

    y3 = jax.block_until_ready(fully_connected(x3, w3, b3, activation='relu'))
    g3 = 1.0 / math.sqrt(K3)
    pre3 = (x3.astype(jnp.float32)
            @ (w3.astype(jnp.bfloat16).astype(jnp.float32) * g3).T
            + b3.astype(jnp.bfloat16).astype(jnp.float32)[None, :])
    ref3 = jnp.maximum(pre3, 0.0) * math.sqrt(2.0)
    assert y3.shape == (M3, N3)
    assert y3.dtype == jnp.bfloat16
    assert jnp.allclose(y3.astype(jnp.float32), ref3, atol=1e-1, rtol=5e-2)

    print("KERNEL_OK")
</pallas_src>

<mosaic_0001>
module attributes {stable_mosaic.version = 11 : i64} {
  func.func @_fc_kernel(%arg0: i32, %arg1: i32, %arg2: i32, %arg3: memref<16x128xf32, #tpu.memory_space<vmem>>, %arg4: memref<128x128xf32, #tpu.memory_space<vmem>>, %arg5: memref<1x128xf32, #tpu.memory_space<vmem>>, %arg6: memref<16x128xf32, #tpu.memory_space<vmem>>, %arg7: memref<16x128xf32, #tpu.memory_space<vmem>>) attributes {dimension_semantics = [#tpu.dimension_semantics<parallel>, #tpu.dimension_semantics<parallel>, #tpu.dimension_semantics<arbitrary>], iteration_bounds = array<i64: 1, 1, 1>, scalar_prefetch = 0 : i64, scratch_operands = 1 : i64, tpu.core_type = #tpu.core_type<tc>, window_params = [{transform_indices = @transform_0, window_bounds = array<i64: 16, 128>}, {transform_indices = @transform_1, window_bounds = array<i64: 128, 128>}, {transform_indices = @transform_2, window_bounds = array<i64: 1, 128>}, {transform_indices = @transform_3, window_bounds = array<i64: 16, 128>}]} {
    %c0_i32 = arith.constant 0 : i32
    %0 = arith.cmpi eq, %arg2, %c0_i32 : i32
    %1 = arith.extui %0 : i1 to i32
    %c0_i32_0 = arith.constant 0 : i32
    %2 = arith.cmpi ne, %1, %c0_i32_0 : i32
    scf.if %2 {
      %cst_10 = arith.constant 0.000000e+00 : f32
      %12 = vector.broadcast %cst_10 : f32 to vector<16x128xf32>
      %c0_11 = arith.constant 0 : index
      %c0_12 = arith.constant 0 : index
      %13 = vector.load %arg7[%c0_11, %c0_12] : memref<16x128xf32, #tpu.memory_space<vmem>>, vector<16x128xf32>
      tpu.vector_store %arg7[%c0_11, %c0_12], %12 {strides = array<i32>} : memref<16x128xf32, #tpu.memory_space<vmem>>, vector<16x128xf32>,
    } else {
    }
    %c0 = arith.constant 0 : index
    %c0_1 = arith.constant 0 : index
    %3 = vector.load %arg7[%c0, %c0_1] : memref<16x128xf32, #tpu.memory_space<vmem>>, vector<16x128xf32>
    %c0_2 = arith.constant 0 : index
    %c0_3 = arith.constant 0 : index
    %4 = vector.load %arg3[%c0_2, %c0_3] : memref<16x128xf32, #tpu.memory_space<vmem>>, vector<16x128xf32>
    %c0_4 = arith.constant 0 : index
    %c0_5 = arith.constant 0 : index
    %5 = vector.load %arg4[%c0_4, %c0_5] : memref<128x128xf32, #tpu.memory_space<vmem>>, vector<128x128xf32>
    %cst = arith.constant dense<0.000000e+00> : vector<16x128xf32>
    %6 = tpu.matmul %4, %5, %cst {dimension_numbers = #tpu.dot_dimension_numbers<[1], [1], [0], [0], [0, 0, 1, 0], [], []>} : vector<16x128xf32>, vector<128x128xf32>, vector<16x128xf32> -> vector<16x128xf32>
    %7 = arith.addf %3, %6 : vector<16x128xf32>
    %c0_6 = arith.constant 0 : index
    %c0_7 = arith.constant 0 : index
    %8 = vector.load %arg7[%c0_6, %c0_7] : memref<16x128xf32, #tpu.memory_space<vmem>>, vector<16x128xf32>
    tpu.vector_store %arg7[%c0_6, %c0_7], %7 {strides = array<i32>} : memref<16x128xf32, #tpu.memory_space<vmem>>, vector<16x128xf32>,
    %c0_i32_8 = arith.constant 0 : i32
    %9 = arith.cmpi eq, %arg2, %c0_i32_8 : i32
    %10 = arith.extui %9 : i1 to i32
    %c0_i32_9 = arith.constant 0 : i32
    %11 = arith.cmpi ne, %10, %c0_i32_9 : i32
    scf.if %11 {
      %c0_10 = arith.constant 0 : index
      %c0_11 = arith.constant 0 : index
      %12 = vector.load %arg7[%c0_10, %c0_11] : memref<16x128xf32, #tpu.memory_space<vmem>>, vector<16x128xf32>
      %cst_12 = arith.constant 1.250000e-01 : f32
      %13 = vector.broadcast %cst_12 : f32 to vector<16x128xf32>
      %14 = arith.mulf %12, %13 : vector<16x128xf32>
      %c0_13 = arith.constant 0 : index
      %c0_14 = arith.constant 0 : index
      %15 = vector.load %arg5[%c0_13, %c0_14] : memref<1x128xf32, #tpu.memory_space<vmem>>, vector<1x128xf32>
      %16 = vector.broadcast %15 : vector<1x128xf32> to vector<16x128xf32>
      %17 = arith.addf %14, %16 : vector<16x128xf32>
      %c0_15 = arith.constant 0 : index
      %c0_16 = arith.constant 0 : index
      %18 = vector.load %arg6[%c0_15, %c0_16] : memref<16x128xf32, #tpu.memory_space<vmem>>, vector<16x128xf32>
      tpu.vector_store %arg6[%c0_15, %c0_16], %17 {strides = array<i32>} : memref<16x128xf32, #tpu.memory_space<vmem>>, vector<16x128xf32>,
    } else {
    }
    return
  }
  func.func @transform_0(%arg0: i32, %arg1: i32, %arg2: i32) -> (i32, i32) {
    %c0_i32 = arith.constant 0 : i32
    return %arg0, %arg2 : i32, i32
  }
  func.func @transform_1(%arg0: i32, %arg1: i32, %arg2: i32) -> (i32, i32) {
    %c0_i32 = arith.constant 0 : i32
    return %arg1, %arg2 : i32, i32
  }
  func.func @transform_2(%arg0: i32, %arg1: i32, %arg2: i32) -> (i32, i32) {
    %c0_i32 = arith.constant 0 : i32
    %c0_i32_0 = arith.constant 0 : i32
    return %c0_i32, %arg1 : i32, i32
  }
  func.func @transform_3(%arg0: i32, %arg1: i32, %arg2: i32) -> (i32, i32) {
    %c0_i32 = arith.constant 0 : i32
    return %arg0, %arg1 : i32, i32
  }
}

</mosaic_0001>

<llo_original>
// kernel: tpu_custom_call.1
$region0: #{tpu_custom_call.1}
  #allocation0 [shape = 'u32[]', space=smem, size = 0x4, offset = 0x4, fixed_abs, tag = 'smem constant byte address 0x4 - core index']
  #allocation1 [shape = 'u32[144,128]{1,0:T(1,128)}', space=vmem, size = 0x12000, scoped, tag = 'internal scratch']
  #allocation2 [shape = 'f32[16,128]{1,0:T(8,128)}', space=vmem, size = 0x2000, scoped, tag = 'scratch operand']
  %s0 = inlined_call_operand.hbm [shape: f32[16,128], index: 0, kind: input, shape index: {}]
  %s1 = inlined_call_operand.hbm [shape: f32[128,128], index: 1, kind: input, shape index: {}]
  %s2 = inlined_call_operand.vmem [shape: f32[1,128], index: 2, kind: input, shape index: {}]
  %s3 = inlined_call_operand.hbm [shape: f32[16,128], index: 3, kind: output, shape index: {}]
  %s4 = sld [smem:[#allocation0]]
  $region38: #{tpu_custom_call.1} parent=0
    _
  %s6 = ssub.s32 1, %s4
  %s7 = scalar_select 0, %s6, %s4
  $region1: #{tpu_custom_call.1} parent=0
    #allocation3 [shape = 'u8[8192]{0}', space=vmem, size = 0x2000, scoped, tag = 'input window, operand 0, single buffered']
    #allocation4 [shape = 's32[1]{0}', space=sflag, size = 0x4, scoped, tag = 'scoped memory for tpu_custom_call.1']
    #allocation5 [shape = 's32[1]{0}', space=sflag, size = 0x4, scoped, tag = 'scoped memory for tpu_custom_call.1']
    #allocation6 [shape = 'u8[65536]{0}', space=vmem, size = 0x10000, scoped, tag = 'input window, operand 1, single buffered']
    #allocation7 [shape = 's32[1]{0}', space=sflag, size = 0x4, scoped, tag = 'scoped memory for tpu_custom_call.1']
    #allocation8 [shape = 'u8[8192]{0}', space=vmem, size = 0x2000, scoped, tag = 'output window, operand 0, single buffered']
    %8 = vsyncpa [#allocation4], 0
    %9 = vsyncpa [#allocation7], 0
    %10 = vsyncpa [#allocation5], 0
    // Predicated region
    $region2: #{tpu_custom_call.1} parent=1 // pred_check
      _
    $region3: #{tpu_custom_call.1} parent=1 // pred_check_branch
      %12 = sbr.rel (0) target = $region5
    $region4: #{tpu_custom_call.1} parent=1 // pred_region
      %s14 = ssub.s32 256, 256
      %15 = vsyncadd [#allocation4], %s14
      %s16 = sshll.u32 [#allocation3], 4
      %s17 = int_to_ptr.vmem [resolvable:$true] %s16
      %22 = dma.hbm_to_vmem [thread:$0]  %s0, 256, %s17, [#allocation4], 128, 128, 8
    $region5: #{tpu_custom_call.1} parent=1 // pred_fallthru
      _
    // Predicated region
    $region6: #{tpu_custom_call.1} parent=1 // pred_check
      _
    $region7: #{tpu_custom_call.1} parent=1 // pred_check_branch
      %24 = sbr.rel (0) target = $region9
    $region8: #{tpu_custom_call.1} parent=1 // pred_region
      %s26 = ssub.s32 2048, 2048
      %27 = vsyncadd [#allocation7], %s26
      %s28 = sshll.u32 [#allocation6], 4
      %s29 = int_to_ptr.vmem [resolvable:$true] %s28
      %34 = dma.hbm_to_vmem [thread:$0]  %s1, 2048, %s29, [#allocation7], 128, 128, 8
    $region9: #{tpu_custom_call.1} parent=1 // pred_fallthru
      _
    // Predicated region
    $region10: #{tpu_custom_call.1} parent=1 // pred_check
      _
    $region11: #{tpu_custom_call.1} parent=1 // pred_check_branch
      %36 = sbr.rel (0) target = $region13
    $region12: #{tpu_custom_call.1} parent=1 // pred_region
      _
    $region13: #{tpu_custom_call.1} parent=1 // pred_fallthru
      _
    // Predicated region
    $region14: #{tpu_custom_call.1} parent=1 // pred_check
      _
    $region15: #{tpu_custom_call.1} parent=1 // pred_check_branch
      %38 = sbr.rel (0) target = $region17
    $region16: #{tpu_custom_call.1} parent=1 // pred_region
      %39 = dma.done [#allocation4], 256
    $region17: #{tpu_custom_call.1} parent=1 // pred_fallthru
      _
    // Predicated region
    $region18: #{tpu_custom_call.1} parent=1 // pred_check
      _
    $region19: #{tpu_custom_call.1} parent=1 // pred_check_branch
      %41 = sbr.rel (0) target = $region21
    $region20: #{tpu_custom_call.1} parent=1 // pred_region
      %42 = dma.done [#allocation7], 2048
    $region21: #{tpu_custom_call.1} parent=1 // pred_fallthru
      _
    %p43 = scmp.eq.s32.totalorder 0, 0
    // Predicated region
    $region22: #{tpu_custom_call.1} parent=1 // pred_check
      %p44 = pneg %p43
    $region23: #{tpu_custom_call.1} parent=1 // pred_check_branch
      %46 = sbr.rel (%p44) target = $region25
    $region24: #{tpu_custom_call.1} parent=1 // pred_region
      %47 = vst [vmem:[#allocation2] sm:$0xff] 0.0
      %48 = vst [vmem:[#allocation2 + $0x8] sm:$0xff] 0.0
    $region25: #{tpu_custom_call.1} parent=1 // pred_fallthru
      _
    %v49 = vld [vmem:[#allocation2] sm:$0xff]
    %v50 = vld [vmem:[#allocation2 + $0x8] sm:$0xff]
    %v51 = vld [vmem:[#allocation3] sm:$0xff]
    %v52 = vld [vmem:[#allocation3 + $0x8] sm:$0xff]
    %v53 = vld [vmem:[#allocation6] sm:$0xff]
    %v54 = vld [vmem:[#allocation6 + $0x8] sm:$0xff]
    %v55 = vld [vmem:[#allocation6 + $0x10] sm:$0xff]
    %v56 = vld [vmem:[#allocation6 + $0x18] sm:$0xff]
    %v57 = vld [vmem:[#allocation6 + $0x20] sm:$0xff]
    %v58 = vld [vmem:[#allocation6 + $0x28] sm:$0xff]
    %v59 = vld [vmem:[#allocation6 + $0x30] sm:$0xff]
    %v60 = vld [vmem:[#allocation6 + $0x38] sm:$0xff]
    %v61 = vld [vmem:[#allocation6 + $0x40] sm:$0xff]
    %v62 = vld [vmem:[#allocation6 + $0x48] sm:$0xff]
    %v63 = vld [vmem:[#allocation6 + $0x50] sm:$0xff]
    %v64 = vld [vmem:[#allocation6 + $0x58] sm:$0xff]
    %v65 = vld [vmem:[#allocation6 + $0x60] sm:$0xff]
    %v66 = vld [vmem:[#allocation6 + $0x68] sm:$0xff]
    %v67 = vld [vmem:[#allocation6 + $0x70] sm:$0xff]
    %v68 = vld [vmem:[#allocation6 + $0x78] sm:$0xff]
    %69 = vmatprep.subr.mxu0 0.0
    %70 = vmatpush1.xpose.msra.mxu0 %v53
    %71 = vmatprep.subr.mxu0 0.0
    %72 = vmatpush1.xpose.msra.mxu0 %v54
    %73 = vmatprep.subr.mxu0 0.0
    %74 = vmatpush1.xpose.msra.mxu0 %v55
    %75 = vmatprep.subr.mxu0 0.0
    %76 = vmatpush1.xpose.msra.mxu0 %v56
    %77 = vmatprep.subr.mxu0 0.0
    %78 = vmatpush1.xpose.msra.mxu0 %v57
    %79 = vmatprep.subr.mxu0 0.0
    %80 = vmatpush1.xpose.msra.mxu0 %v58
    %81 = vmatprep.subr.mxu0 0.0
    %82 = vmatpush1.xpose.msra.mxu0 %v59
    %83 = vmatprep.subr.mxu0 0.0
    %84 = vmatpush1.xpose.msra.mxu0 %v60
    %85 = vmatprep.subr.mxu0 0.0
    %86 = vmatpush1.xpose.msra.mxu0 %v61
    %87 = vmatprep.subr.mxu0 0.0
    %88 = vmatpush1.xpose.msra.mxu0 %v62
    %89 = vmatprep.subr.mxu0 0.0
    %90 = vmatpush1.xpose.msra.mxu0 %v63
    %91 = vmatprep.subr.mxu0 0.0
    %92 = vmatpush1.xpose.msra.mxu0 %v64
    %93 = vmatprep.subr.mxu0 0.0
    %94 = vmatpush1.xpose.msra.mxu0 %v65
    %95 = vmatprep.subr.mxu0 0.0
    %96 = vmatpush1.xpose.msra.mxu0 %v66
    %97 = vmatprep.subr.mxu0 0.0
    %98 = vmatpush1.xpose.msra.mxu0 %v67
    %99 = vmatprep.subr.mxu0 0.0
    %100 = vmatpush1.xpose.msra.mxu0 %v68
    %101 = vmatprep.subr.mxu0 0.0
    %102 = vmatpush1.xpose.msra.mxu0 0.0
    %103 = vmatprep.subr.mxu0 0.0
    %104 = vmatpush1.xpose.msra.mxu0 0.0
    %105 = vmatprep.subr.mxu0 0.0
    %106 = vmatpush1.xpose.msra.mxu0 0.0
    %107 = vmatprep.subr.mxu0 0.0
    %108 = vmatpush1.xpose.msra.mxu0 0.0
    %109 = vmatprep.subr.mxu0 0.0
    %110 = vmatpush1.xpose.msra.mxu0 0.0
    %111 = vmatprep.subr.mxu0 0.0
    %112 = vmatpush1.xpose.msra.mxu0 0.0
    %113 = vmatprep.subr.mxu0 0.0
    %114 = vmatpush1.xpose.msra.mxu0 0.0
    %115 = vmatprep.subr.mxu0 0.0
    %116 = vmatpush1.xpose.msra.mxu0 0.0
    %117 = vmatprep.subr.mxu0 0.0
    %118 = vmatpush1.xpose.msra.mxu0 0.0
    %119 = vmatprep.subr.mxu0 0.0
    %120 = vmatpush1.xpose.msra.mxu0 0.0
    %121 = vmatprep.subr.mxu0 0.0
    %122 = vmatpush1.xpose.msra.mxu0 0.0
    %123 = vmatprep.subr.mxu0 0.0
    %124 = vmatpush1.xpose.msra.mxu0 0.0
    %125 = vmatprep.subr.mxu0 0.0
    %126 = vmatpush1.xpose.msra.mxu0 0.0
    %127 = vmatprep.subr.mxu0 0.0
    %128 = vmatpush1.xpose.msra.mxu0 0.0
    %129 = vmatprep.subr.mxu0 0.0
    %130 = vmatpush1.xpose.msra.mxu0 0.0
    %131 = vmatprep.subr.mxu0 0.0
    %132 = vmatpush1.xpose.msra.mxu0 0.0
    %133 = vmatprep.mubr.f32.mxu0 0.0
    %134 = vmatmul.mubr.f32.gmra.mrb[0].mxu0 %v51
    %v135 = vpop.f32.mrb[0].mxu0
    %v136 = vadd.f32 0.0, %v135
    %v137 = vpop.f32.mrb[0].mxu0
    %138 = vmatprep.mubr.f32.mxu0 0.0
    %139 = vmatmul.mubr.f32.gmra.mrb[0].mxu0 %v52
    %v140 = vpop.f32.mrb[0].mxu0
    %v141 = vadd.f32 0.0, %v140
    %v142 = vpop.f32.mrb[0].mxu0
    %143 = vdwg.mxu0
    %v144 = vadd.f32 %v49, %v136
    %v145 = vadd.f32 %v50, %v141
    %146 = vst [vmem:[#allocation2] sm:$0xff] %v144
    %147 = vst [vmem:[#allocation2 + $0x8] sm:$0xff] %v145
    // Predicated region
    $region26: #{tpu_custom_call.1} parent=1 // pred_check
      %p148 = pneg %p43
    $region27: #{tpu_custom_call.1} parent=1 // pred_check_branch
      %150 = sbr.rel (%p148) target = $region29
    $region28: #{tpu_custom_call.1} parent=1 // pred_region
      %v151 = vld [vmem:[#allocation2] sm:$0xff]
      %v152 = vld [vmem:[#allocation2 + $0x8] sm:$0xff]
      %v153 = vmul.f32 %v151, 0.125
      %v154 = vmul.f32 %v152, 0.125
      %v155 = vld [vmem:[%s2] sm:$0x1]
      %v157 = vlaneseq
      %v158 = vshrl.u32 %v157, 7
      %v159 = vsub.s32 0, %v158
      %v160 = vrot.slane %v155, %v159
      %v162 = vadd.f32 %v153, %v160
      %v163 = vadd.f32 %v154, %v160
      %164 = vst [vmem:[#allocation8] sm:$0xff] %v162
      %165 = vst [vmem:[#allocation8 + $0x8] sm:$0xff] %v163
    $region29: #{tpu_custom_call.1} parent=1 // pred_fallthru
      _
    // Predicated region
    $region30: #{tpu_custom_call.1} parent=1 // pred_check
      _
    $region31: #{tpu_custom_call.1} parent=1 // pred_check_branch
      %167 = sbr.rel (0) target = $region33
    $region32: #{tpu_custom_call.1} parent=1 // pred_region
      %s169 = ssub.s32 256, 256
      %170 = vsyncadd [#allocation5], %s169
      %s171 = sshll.u32 [#allocation8], 4
      %s172 = int_to_ptr.vmem [resolvable:$true] %s171
      %177 = dma.vmem_to_hbm [thread:$0]  %s172, 256, %s3, [#allocation5], 128, 128, 8
    $region33: #{tpu_custom_call.1} parent=1 // pred_fallthru
      _
    // Predicated region
    $region34: #{tpu_custom_call.1} parent=1 // pred_check
      _
    $region35: #{tpu_custom_call.1} parent=1 // pred_check_branch
      %179 = sbr.rel (0) target = $region37
    $region36: #{tpu_custom_call.1} parent=1 // pred_region
      %180 = dma.done [#allocation5], 256
    $region37: #{tpu_custom_call.1} parent=1 // pred_fallthru
      _
    %181 = vsyncpa [#allocation4], 1
    %182 = vsyncpa [#allocation7], 1
    %183 = vsyncpa [#allocation5], 1

</llo_original>
